<compile_context>
chip_gen: v7x
topology: tpu7x:2x2x1
jax: 0.10.0
libtpu: 0.0.40
codegen_flags: <defaults>
</compile_context>

<pallas_src>
import functools

import jax
import jax.numpy as jnp
import numpy as np
from jax.experimental import pallas as pl
from jax.experimental.pallas import tpu as pltpu

_LANE = 128
_SUBLANE = 8


def _cdiv(a, b):
    return -(-a // b)


def _round_up(n, m):
    return _cdiv(n, m) * m


def _vmem_cap_bytes():
    """Per-core VMEM capacity (128 MiB v5e/v6e, 64 MiB v7x); conservative default."""
    try:
        return int(pltpu.get_tpu_info().vmem_capacity_bytes)
    except Exception:
        return 64 << 20


# --------------------------------------------------------------------------- #
# Kernel
# --------------------------------------------------------------------------- #
def _mlp_kernel(x_ref, w1_ref, b1_ref, w2_ref, b2_ref, o_ref, acc_ref, *,
                compute_dtype, exact_gelu):
    # x_ref: (tm, Hp) input dtype | w1_ref: (Hp, Cblk) | b1_ref: (1, Cblk) f32
    # w2_ref: (Cblk, Hp)          | b2_ref: (1, Hp) f32 | o_ref: (tm, Hp)
    # acc_ref: (tm, Hp) f32 scratch accumulator over the C-blocks.
    c = pl.program_id(1)

    @pl.when(c == 0)
    def _init():
        acc_ref[...] = jnp.zeros_like(acc_ref)

    # fc1 on the MXU (bf16 inputs by default, f32 accumulation); cast at the
    # point of use so the wrapper never materializes a cast copy of x in HBM.
    x = x_ref[...].astype(compute_dtype)
    h = jnp.dot(x, w1_ref[...], preferred_element_type=jnp.float32) + b1_ref[...]

    # tanh GELU routes the transcendental to the otherwise-idle EUP slot; exact
    # erf (torch nn.GELU() default) is a long VALU polynomial -> behind a flag.
    h = jax.nn.gelu(h, approximate=not exact_gelu)

    # fc2 partial product for this C-block, accumulated in f32.
    acc_ref[...] += jnp.dot(h.astype(compute_dtype), w2_ref[...],
                            preferred_element_type=jnp.float32)

    @pl.when(c == pl.num_programs(1) - 1)
    def _finalize():
        # Dropout(hidden_dropout_prob) is identity in eval mode.
        # TODO(synk): training-mode dropout (pltpu.prng_random_bits mask) not emitted.
        o_ref[...] = (acc_ref[...] + b2_ref[...]).astype(o_ref.dtype)


# --------------------------------------------------------------------------- #
# Tiling / VMEM plan
# --------------------------------------------------------------------------- #
def _plan(M, H, C, x_bytes, out_bytes, c_bytes, tm_req, vmem_cap):
    H_pad = _round_up(H, _LANE)
    C_min = _round_up(C, _LANE)
    budget = int(vmem_cap * 0.75)          # leave compiler scratch / spill headroom

    def footprint(tm, c_blk):
        wgt = 2 * (2 * H_pad * c_blk * c_bytes + 4 * (c_blk + H_pad))  # w1,w2,b1,b2 (x2 buf)
        act = 2 * tm * H_pad * (x_bytes + out_bytes)                   # x/out tiles (x2 buf)
        acc = tm * H_pad * 4                                           # f32 accumulator
        tmp = tm * c_blk * (4 + c_bytes) + tm * H_pad * c_bytes        # h f32 + casts
        return wgt + act + acc + tmp

    tm_try = max(_SUBLANE, _round_up(min(tm_req, max(M, 1)), _SUBLANE))
    while True:
        # Balanced token tiling: padding never exceeds ~one sublane per tile.
        n_m = _cdiv(M, tm_try)
        if n_m > 1 and n_m % 2:
            n_m += 1               # even step count -> balanced over v7x's 2 TCs
        tm = _round_up(_cdiv(M, n_m), _SUBLANE)
        M_pad = n_m * tm

        # Balanced C-blocking; weights are explicitly zero-padded to n_c * c_blk.
        c_blk = min(C_min, 2048)
        n_c = _cdiv(C_min, c_blk)
        c_blk = _round_up(_cdiv(C_min, n_c), _LANE)
        while c_blk > _LANE and footprint(tm, c_blk) > budget:
            n_c += 1
            c_blk = _round_up(_cdiv(C_min, n_c), _LANE)
        C_pad = n_c * c_blk

        fp = footprint(tm, c_blk)
        if fp <= budget or tm <= 64:
            vmem_limit = int(min(max(fp + (4 << 20), 16 << 20), vmem_cap))
            return tm, n_m, M_pad, c_blk, n_c, C_pad, H_pad, vmem_limit
        tm_try = max(_SUBLANE, tm_try // 2)


# --------------------------------------------------------------------------- #
# Forward
# --------------------------------------------------------------------------- #
@functools.partial(
    jax.jit, static_argnames=("tm", "compute_dtype", "exact_gelu", "vmem_cap"))
def _mlp_forward(x, w1, b1, w2, b2, *, tm, compute_dtype, exact_gelu, vmem_cap):
    B, S, H = x.shape
    C = w1.shape[1]
    M = B * S

    cdt = np.dtype(compute_dtype)
    out_dt = x.dtype
    (tm_eff, n_m, M_pad, c_blk, n_c, C_pad, H_pad, vmem_limit) = _plan(
        M, H, C, x.dtype.itemsize, np.dtype(out_dt).itemsize, cdt.itemsize,
        tm, vmem_cap)

    # Activations: original dtype in HBM (cast happens inside the kernel); pad
    # only when actually needed (no copy for the common H%128==0 vision shapes).
    x2d = x.reshape(M, H)
    if (M_pad, H_pad) != (M, H):
        x2d = jnp.pad(x2d, ((0, M_pad - M), (0, H_pad - H)))

    # Weights/biases: cast to MXU dtype + zero-pad (exact: padded K columns and
    # padded C blocks contribute zero).
    # TODO(synk): cache prepared (cast+padded) params across calls to skip this pass.
    w1p = jnp.pad(w1.astype(cdt), ((0, H_pad - H), (0, C_pad - C)))
    w2p = jnp.pad(w2.astype(cdt), ((0, C_pad - C), (0, H_pad - H)))
    b1p = jnp.pad(b1.astype(jnp.float32), (0, C_pad - C)).reshape(1, C_pad)
    b2p = jnp.pad(b2.astype(jnp.float32), (0, H_pad - H)).reshape(1, H_pad)

    kernel = functools.partial(_mlp_kernel, compute_dtype=cdt,
                               exact_gelu=exact_gelu)

    cost = pl.CostEstimate(
        flops=4 * M_pad * H_pad * C_pad,
        transcendentals=(0 if exact_gelu else M_pad * C_pad),   # tanh GELU
        bytes_accessed=(M_pad * H_pad * (x.dtype.itemsize + np.dtype(out_dt).itemsize)
                        + 2 * H_pad * C_pad * cdt.itemsize + 4 * (H_pad + C_pad)),
    )

    out2d = pl.pallas_call(
        kernel,
        out_shape=jax.ShapeDtypeStruct((M_pad, H_pad), out_dt),
        grid_spec=pltpu.PrefetchScalarGridSpec(
            num_scalar_prefetch=0,
            grid=(n_m, n_c),                      # tokens (parallel) x C-blocks (reduce)
            in_specs=[
                pl.BlockSpec((tm_eff, H_pad), lambda i, c: (i, 0)),   # x tile (resident over c)
                pl.BlockSpec((H_pad, c_blk), lambda i, c: (0, c)),    # w1 C-block
                pl.BlockSpec((1, c_blk), lambda i, c: (0, c)),        # b1 C-block
                pl.BlockSpec((c_blk, H_pad), lambda i, c: (c, 0)),    # w2 C-block
                pl.BlockSpec((1, H_pad), lambda i, c: (0, 0)),        # b2 (resident)
            ],
            out_specs=pl.BlockSpec((tm_eff, H_pad), lambda i, c: (i, 0)),
            scratch_shapes=[pltpu.VMEM((tm_eff, H_pad), jnp.float32)],
        ),
        compiler_params=pltpu.CompilerParams(
            dimension_semantics=("parallel", "arbitrary"),
            vmem_limit_bytes=vmem_limit,
        ),
        cost_estimate=cost,
    )(x2d, w1p, b1p, w2p, b2p)

    return out2d[:M, :H].reshape(B, S, H)


def linear_attn_vision_mlp(x, w1, b1, w2, b2, *, tm=512,
                           compute_dtype=jnp.bfloat16, exact_gelu=False,
                           force_pallas=False):
    """Inference forward of LinearAttentionVisionMLP.

    x: [B, S, H]; w1: [H, C]; b1: [C]; w2: [C, H]; b2: [H] -> [B, S, H].
    compute_dtype: MXU matmul input dtype (bf16 default; accumulation, bias-add
      and GELU are always f32).  Pass jnp.float32 for torch-f32-tight numerics.
    exact_gelu: erf GELU (torch nn.GELU() default) instead of the faster tanh
      approximation (default off per perf guidance; max abs diff ~1e-3).
    """
    B, S, H = x.shape
    C = w1.shape[1]
    M = B * S

    # Tiny problems: fixed kernel overhead + K-padding waste dominates -> plain XLA.
    if not force_pallas and M * H * C < (1 << 21):
        h = jnp.dot(x, w1, preferred_element_type=jnp.float32) + b1
        h = jax.nn.gelu(h, approximate=not exact_gelu)
        y = jnp.dot(h.astype(w2.dtype), w2, preferred_element_type=jnp.float32) + b2
        return y.astype(x.dtype)

    return _mlp_forward(x, w1, b1, w2, b2, tm=int(tm),
                        compute_dtype=np.dtype(compute_dtype),
                        exact_gelu=bool(exact_gelu),
                        vmem_cap=_vmem_cap_bytes())


def _init_params(key, hidden_size, channel_mixer_dim, dtype=jnp.float32):
    """Deterministic init mimicking nn.Linear defaults (uniform +-1/sqrt(fan_in))."""
    k1, k2, k3, k4 = jax.random.split(key, 4)
    bound1 = 1.0 / (hidden_size ** 0.5)
    bound2 = 1.0 / (channel_mixer_dim ** 0.5)
    # Weights stored already transposed to [in, out] for the kernel's x @ W form.
    w1 = jax.random.uniform(k1, (hidden_size, channel_mixer_dim), dtype,
                            minval=-bound1, maxval=bound1)
    b1 = jax.random.uniform(k2, (channel_mixer_dim,), dtype,
                            minval=-bound1, maxval=bound1)
    w2 = jax.random.uniform(k3, (channel_mixer_dim, hidden_size), dtype,
                            minval=-bound2, maxval=bound2)
    b2 = jax.random.uniform(k4, (hidden_size,), dtype,
                            minval=-bound2, maxval=bound2)
    return w1, b1, w2, b2


if __name__ == "__main__":
    # Small config consistent with the module: hidden_size=32, channel_mixer_dim=64,
    # batch=2, 16 vision tokens.
    B, S, H, C = 2, 16, 32, 64

    key = jax.random.PRNGKey(0)
    kx, kp = jax.random.split(key)
    x = jax.random.normal(kx, (B, S, H), jnp.float32)
    w1, b1, w2, b2 = _init_params(kp, H, C)

    # Plain-JAX references (eval mode => dropout identity).
    ref_tanh = jax.nn.gelu(x @ w1 + b1, approximate=True) @ w2 + b2
    ref_erf = jax.nn.gelu(x @ w1 + b1, approximate=False) @ w2 + b2

    # 1) Pallas kernel, default bf16 matmuls + tanh GELU (forced so the kernel
    #    actually executes at this tiny demo size).
    out = jax.block_until_ready(
        linear_attn_vision_mlp(x, w1, b1, w2, b2, force_pallas=True))
    assert out.shape == (B, S, H)
    assert jnp.allclose(out, ref_tanh, atol=5e-2, rtol=5e-2), "bf16/tanh mismatch"

    # 2) Pallas kernel, f32 matmuls + exact erf GELU (torch-reference numerics).
    out_f32 = jax.block_until_ready(
        linear_attn_vision_mlp(x, w1, b1, w2, b2, compute_dtype=jnp.float32,
                               exact_gelu=True, force_pallas=True))
    assert jnp.allclose(out_f32, ref_erf, atol=1e-5, rtol=1e-5), "f32/erf mismatch"

    # 3) Auto path at tiny size takes the plain-XLA fallback -- sanity check.
    out_auto = jax.block_until_ready(linear_attn_vision_mlp(x, w1, b1, w2, b2))
    assert jnp.allclose(out_auto, ref_tanh, atol=1e-5, rtol=1e-5)

    print("KERNEL_OK")
</pallas_src>

<mosaic_0001>
module attributes {stable_mosaic.version = 11 : i64} {
  func.func @_mlp_kernel(%arg0: i32, %arg1: i32, %arg2: memref<32x128xf32, #tpu.memory_space<vmem>>, %arg3: memref<128x128xbf16, #tpu.memory_space<vmem>>, %arg4: memref<1x128xf32, #tpu.memory_space<vmem>>, %arg5: memref<128x128xbf16, #tpu.memory_space<vmem>>, %arg6: memref<1x128xf32, #tpu.memory_space<vmem>>, %arg7: memref<32x128xf32, #tpu.memory_space<vmem>>, %arg8: memref<32x128xf32, #tpu.memory_space<vmem>>) attributes {dimension_semantics = [#tpu.dimension_semantics<parallel>, #tpu.dimension_semantics<arbitrary>], iteration_bounds = array<i64: 1, 1>, scalar_prefetch = 0 : i64, scratch_operands = 1 : i64, tpu.core_type = #tpu.core_type<tc>, window_params = [{transform_indices = @transform_0, window_bounds = array<i64: 32, 128>}, {transform_indices = @transform_1, window_bounds = array<i64: 128, 128>}, {transform_indices = @transform_2, window_bounds = array<i64: 1, 128>}, {transform_indices = @transform_3, window_bounds = array<i64: 128, 128>}, {pipeline_mode = #tpu.pipeline_mode<synchronous>, transform_indices = @transform_4, window_bounds = array<i64: 1, 128>}, {transform_indices = @transform_5, window_bounds = array<i64: 32, 128>}]} {
    %c0_i32 = arith.constant 0 : i32
    %0 = arith.cmpi eq, %arg1, %c0_i32 : i32
    %1 = arith.extui %0 : i1 to i32
    %c0_i32_0 = arith.constant 0 : i32
    %2 = arith.cmpi ne, %1, %c0_i32_0 : i32
    scf.if %2 {
      %cst_19 = arith.constant 0.000000e+00 : f32
      %32 = vector.broadcast %cst_19 : f32 to vector<32x128xf32>
      %c0_20 = arith.constant 0 : index
      %c0_21 = arith.constant 0 : index
      %33 = vector.load %arg8[%c0_20, %c0_21] : memref<32x128xf32, #tpu.memory_space<vmem>>, vector<32x128xf32>
      tpu.vector_store %arg8[%c0_20, %c0_21], %32 {strides = array<i32>} : memref<32x128xf32, #tpu.memory_space<vmem>>, vector<32x128xf32>,
    } else {
    }
    %c0 = arith.constant 0 : index
    %c0_1 = arith.constant 0 : index
    %3 = vector.load %arg2[%c0, %c0_1] : memref<32x128xf32, #tpu.memory_space<vmem>>, vector<32x128xf32>
    %4 = arith.truncf %3 : vector<32x128xf32> to vector<32x128xbf16>
    %c0_2 = arith.constant 0 : index
    %c0_3 = arith.constant 0 : index
    %5 = vector.load %arg3[%c0_2, %c0_3] : memref<128x128xbf16, #tpu.memory_space<vmem>>, vector<128x128xbf16>
    %cst = arith.constant dense<0.000000e+00> : vector<32x128xf32>
    %6 = tpu.matmul %4, %5, %cst {dimension_numbers = #tpu.dot_dimension_numbers<[1], [0], [0], [1], [0, 0, 1, 1], [], []>} : vector<32x128xbf16>, vector<128x128xbf16>, vector<32x128xf32> -> vector<32x128xf32>
    %c0_4 = arith.constant 0 : index
    %c0_5 = arith.constant 0 : index
    %7 = vector.load %arg4[%c0_4, %c0_5] : memref<1x128xf32, #tpu.memory_space<vmem>>, vector<1x128xf32>
    %8 = vector.broadcast %7 : vector<1x128xf32> to vector<32x128xf32>
    %9 = arith.addf %6, %8 : vector<32x128xf32>
    %10 = arith.mulf %9, %9 : vector<32x128xf32>
    %11 = arith.mulf %9, %10 : vector<32x128xf32>
    %cst_6 = arith.constant 4.471500e-02 : f32
    %12 = vector.broadcast %cst_6 : f32 to vector<32x128xf32>
    %13 = arith.mulf %12, %11 : vector<32x128xf32>
    %14 = arith.addf %9, %13 : vector<32x128xf32>
    %cst_7 = arith.constant 0.797884583 : f32
    %15 = vector.broadcast %cst_7 : f32 to vector<32x128xf32>
    %16 = arith.mulf %15, %14 : vector<32x128xf32>
    %17 = math.tanh %16 : vector<32x128xf32>
    %cst_8 = arith.constant 1.000000e+00 : f32
    %18 = vector.broadcast %cst_8 : f32 to vector<32x128xf32>
    %19 = arith.addf %18, %17 : vector<32x128xf32>
    %cst_9 = arith.constant 5.000000e-01 : f32
    %20 = vector.broadcast %cst_9 : f32 to vector<32x128xf32>
    %21 = arith.mulf %20, %19 : vector<32x128xf32>
    %22 = arith.mulf %9, %21 : vector<32x128xf32>
    %c0_10 = arith.constant 0 : index
    %c0_11 = arith.constant 0 : index
    %23 = vector.load %arg8[%c0_10, %c0_11] : memref<32x128xf32, #tpu.memory_space<vmem>>, vector<32x128xf32>
    %24 = arith.truncf %22 : vector<32x128xf32> to vector<32x128xbf16>
    %c0_12 = arith.constant 0 : index
    %c0_13 = arith.constant 0 : index
    %25 = vector.load %arg5[%c0_12, %c0_13] : memref<128x128xbf16, #tpu.memory_space<vmem>>, vector<128x128xbf16>
    %cst_14 = arith.constant dense<0.000000e+00> : vector<32x128xf32>
    %26 = tpu.matmul %24, %25, %cst_14 {dimension_numbers = #tpu.dot_dimension_numbers<[1], [0], [0], [1], [0, 0, 1, 1], [], []>} : vector<32x128xbf16>, vector<128x128xbf16>, vector<32x128xf32> -> vector<32x128xf32>
    %27 = arith.addf %23, %26 : vector<32x128xf32>
    %c0_15 = arith.constant 0 : index
    %c0_16 = arith.constant 0 : index
    %28 = vector.load %arg8[%c0_15, %c0_16] : memref<32x128xf32, #tpu.memory_space<vmem>>, vector<32x128xf32>
    tpu.vector_store %arg8[%c0_15, %c0_16], %27 {strides = array<i32>} : memref<32x128xf32, #tpu.memory_space<vmem>>, vector<32x128xf32>,
    %c0_i32_17 = arith.constant 0 : i32
    %29 = arith.cmpi eq, %arg1, %c0_i32_17 : i32
    %30 = arith.extui %29 : i1 to i32
    %c0_i32_18 = arith.constant 0 : i32
    %31 = arith.cmpi ne, %30, %c0_i32_18 : i32
    scf.if %31 {
      %c0_19 = arith.constant 0 : index
      %c0_20 = arith.constant 0 : index
      %32 = vector.load %arg8[%c0_19, %c0_20] : memref<32x128xf32, #tpu.memory_space<vmem>>, vector<32x128xf32>
      %c0_21 = arith.constant 0 : index
      %c0_22 = arith.constant 0 : index
      %33 = vector.load %arg6[%c0_21, %c0_22] : memref<1x128xf32, #tpu.memory_space<vmem>>, vector<1x128xf32>
      %34 = vector.broadcast %33 : vector<1x128xf32> to vector<32x128xf32>
      %35 = arith.addf %32, %34 : vector<32x128xf32>
      %c0_23 = arith.constant 0 : index
      %c0_24 = arith.constant 0 : index
      %36 = vector.load %arg7[%c0_23, %c0_24] : memref<32x128xf32, #tpu.memory_space<vmem>>, vector<32x128xf32>
      tpu.vector_store %arg7[%c0_23, %c0_24], %35 {strides = array<i32>} : memref<32x128xf32, #tpu.memory_space<vmem>>, vector<32x128xf32>,
    } else {
    }
    return
  }
  func.func @transform_0(%arg0: i32, %arg1: i32) -> (i32, i32) {
    %c0_i32 = arith.constant 0 : i32
    %c0_i32_0 = arith.constant 0 : i32
    return %arg0, %c0_i32 : i32, i32
  }
  func.func @transform_1(%arg0: i32, %arg1: i32) -> (i32, i32) {
    %c0_i32 = arith.constant 0 : i32
    %c0_i32_0 = arith.constant 0 : i32
    return %c0_i32, %arg1 : i32, i32
  }
  func.func @transform_2(%arg0: i32, %arg1: i32) -> (i32, i32) {
    %c0_i32 = arith.constant 0 : i32
    %c0_i32_0 = arith.constant 0 : i32
    return %c0_i32, %arg1 : i32, i32
  }
  func.func @transform_3(%arg0: i32, %arg1: i32) -> (i32, i32) {
    %c0_i32 = arith.constant 0 : i32
    %c0_i32_0 = arith.constant 0 : i32
    return %arg1, %c0_i32 : i32, i32
  }
  func.func @transform_4(%arg0: i32, %arg1: i32) -> (i32, i32) {
    %c0_i32 = arith.constant 0 : i32
    %c0_i32_0 = arith.constant 0 : i32
    %c0_i32_1 = arith.constant 0 : i32
    return %c0_i32, %c0_i32_0 : i32, i32
  }
  func.func @transform_5(%arg0: i32, %arg1: i32) -> (i32, i32) {
    %c0_i32 = arith.constant 0 : i32
    %c0_i32_0 = arith.constant 0 : i32
    return %arg0, %c0_i32 : i32, i32
  }
}

</mosaic_0001>

<llo_original>
// kernel: _mlp_forward.1
$region0: #{_mlp_forward.1}
  #allocation0 [shape = 'u32[]', space=smem, size = 0x4, offset = 0x4, fixed_abs, tag = 'smem constant byte address 0x4 - core index']
  #allocation1 [shape = 'u32[144,128]{1,0:T(1,128)}', space=vmem, size = 0x12000, scoped, tag = 'internal scratch']
  #allocation2 [shape = 'f32[32,128]{1,0:T(8,128)}', space=vmem, size = 0x4000, scoped, tag = 'scratch operand']
  %s0 = inlined_call_operand.vmem [shape: f32[32,128], index: 0, kind: input, shape index: {}]
  %s1 = inlined_call_operand.vmem [shape: bf16[128,128], index: 1, kind: input, shape index: {}]
  %s2 = inlined_call_operand.vmem [shape: f32[1,128], index: 2, kind: input, shape index: {}]
  %s3 = inlined_call_operand.vmem [shape: bf16[128,128], index: 3, kind: input, shape index: {}]
  %s4 = inlined_call_operand.vmem [shape: f32[1,128], index: 4, kind: input, shape index: {}]
  %s5 = inlined_call_operand.hbm [shape: f32[32,128], index: 5, kind: output, shape index: {}]
  %s6 = sld [smem:[#allocation0]]
  $region38: #{_mlp_forward.1} parent=0
    _
  %s8 = ssub.s32 1, %s6
  %s9 = scalar_select 0, %s8, %s6
  $region1: #{_mlp_forward.1} parent=0
    #allocation3 [shape = 'u8[16384]{0}', space=vmem, size = 0x4000, scoped, tag = 'output window, operand 0, single buffered']
    #allocation4 [shape = 's32[1]{0}', space=sflag, size = 0x4, scoped, tag = 'scoped memory for _mlp_forward.1']
    %10 = vsyncpa [#allocation4], 0
    // Predicated region
    $region2: #{_mlp_forward.1} parent=1 // pred_check
      _
    $region3: #{_mlp_forward.1} parent=1 // pred_check_branch
      %12 = sbr.rel (0) target = $region5
    $region4: #{_mlp_forward.1} parent=1 // pred_region
      _
    $region5: #{_mlp_forward.1} parent=1 // pred_fallthru
      _
    // Predicated region
    $region6: #{_mlp_forward.1} parent=1 // pred_check
      _
    $region7: #{_mlp_forward.1} parent=1 // pred_check_branch
      %14 = sbr.rel (0) target = $region9
    $region8: #{_mlp_forward.1} parent=1 // pred_region
      _
    $region9: #{_mlp_forward.1} parent=1 // pred_fallthru
      _
    // Predicated region
    $region10: #{_mlp_forward.1} parent=1 // pred_check
      _
    $region11: #{_mlp_forward.1} parent=1 // pred_check_branch
      %16 = sbr.rel (0) target = $region13
    $region12: #{_mlp_forward.1} parent=1 // pred_region
      _
    $region13: #{_mlp_forward.1} parent=1 // pred_fallthru
      _
    // Predicated region
    $region14: #{_mlp_forward.1} parent=1 // pred_check
      _
    $region15: #{_mlp_forward.1} parent=1 // pred_check_branch
      %18 = sbr.rel (0) target = $region17
    $region16: #{_mlp_forward.1} parent=1 // pred_region
      _
    $region17: #{_mlp_forward.1} parent=1 // pred_fallthru
      _
    // Predicated region
    $region18: #{_mlp_forward.1} parent=1 // pred_check
      _
    $region19: #{_mlp_forward.1} parent=1 // pred_check_branch
      %20 = sbr.rel (0) target = $region21
    $region20: #{_mlp_forward.1} parent=1 // pred_region
      _
    $region21: #{_mlp_forward.1} parent=1 // pred_fallthru
      _
    %p22 = scmp.eq.s32.totalorder 0, 0
    // Predicated region
    $region22: #{_mlp_forward.1} parent=1 // pred_check
      %p23 = pneg %p22
    $region23: #{_mlp_forward.1} parent=1 // pred_check_branch
      %25 = sbr.rel (%p23) target = $region25
    $region24: #{_mlp_forward.1} parent=1 // pred_region
      %26 = vst [vmem:[#allocation2] sm:$0xff] 0.0
      %27 = vst [vmem:[#allocation2 + $0x8] sm:$0xff] 0.0
      %28 = vst [vmem:[#allocation2 + $0x10] sm:$0xff] 0.0
      %29 = vst [vmem:[#allocation2 + $0x18] sm:$0xff] 0.0
    $region25: #{_mlp_forward.1} parent=1 // pred_fallthru
      _
    %v30 = vld [vmem:[%s0] sm:$0xff]
    %v31 = vld [vmem:[%s0 + $0x8] sm:$0xff]
    %v32 = vld [vmem:[%s0 + $0x10] sm:$0xff]
    %v33 = vld [vmem:[%s0 + $0x18] sm:$0xff]
    %v34 = vpack.c.bf16 %v31, %v30
    %v35 = vpack.c.bf16 %v33, %v32
    %v36 = vld [vmem:[%s1] sm:$0xf]
    %v37 = vld [vmem:[%s1 + $0x4] sm:$0xf]
    %v38 = vld [vmem:[%s1 + $0x8] sm:$0xf]
    %v39 = vld [vmem:[%s1 + $0xc] sm:$0xf]
    %v40 = vld [vmem:[%s1 + $0x10] sm:$0xf]
    %v41 = vld [vmem:[%s1 + $0x14] sm:$0xf]
    %v42 = vld [vmem:[%s1 + $0x18] sm:$0xf]
    %v43 = vld [vmem:[%s1 + $0x1c] sm:$0xf]
    %v44 = vld [vmem:[%s1 + $0x20] sm:$0xf]
    %v45 = vld [vmem:[%s1 + $0x24] sm:$0xf]
    %v46 = vld [vmem:[%s1 + $0x28] sm:$0xf]
    %v47 = vld [vmem:[%s1 + $0x2c] sm:$0xf]
    %v48 = vld [vmem:[%s1 + $0x30] sm:$0xf]
    %v49 = vld [vmem:[%s1 + $0x34] sm:$0xf]
    %v50 = vld [vmem:[%s1 + $0x38] sm:$0xf]
    %v51 = vld [vmem:[%s1 + $0x3c] sm:$0xf]
    %v52 = vld [vmem:[%s2] sm:$0x1]
    %v54 = vlaneseq
    %v55 = vshrl.u32 %v54, 7
    %v56 = vsub.s32 0, %v55
    %v57 = vrot.slane %v52, %v56
    %v75 = vunpack.c.l.b16 %v36
    %v76 = vunpack.c.l.b16 %v37
    %v77 = vunpack.c.l.b16 %v38
    %v78 = vunpack.c.l.b16 %v39
    %v79 = vunpack.c.l.b16 %v40
    %v80 = vunpack.c.l.b16 %v41
    %v81 = vunpack.c.l.b16 %v42
    %v82 = vunpack.c.l.b16 %v43
    %v83 = vunpack.c.l.b16 %v44
    %v84 = vunpack.c.l.b16 %v45
    %v85 = vunpack.c.l.b16 %v46
    %v86 = vunpack.c.l.b16 %v47
    %v87 = vunpack.c.l.b16 %v48
    %v88 = vunpack.c.l.b16 %v49
    %v89 = vunpack.c.l.b16 %v50
    %v90 = vunpack.c.l.b16 %v51
    %v91 = vpack.c.b16 %v76, %v75
    %v92 = vpack.c.b16 %v78, %v77
    %v93 = vpack.c.b16 %v80, %v79
    %v94 = vpack.c.b16 %v82, %v81
    %v95 = vpack.c.b16 %v84, %v83
    %v96 = vpack.c.b16 %v86, %v85
    %v97 = vpack.c.b16 %v88, %v87
    %v98 = vpack.c.b16 %v90, %v89
    %107 = vmatprep.subr.bf16.mxu0 0
    %108 = vmatpush1.bf16.msra.mxu0 %v91
    %109 = vmatprep.subr.bf16.mxu0 0
    %110 = vmatpush1.bf16.msra.mxu0 %v92
    %111 = vmatprep.subr.bf16.mxu0 0
    %112 = vmatpush1.bf16.msra.mxu0 %v93
    %113 = vmatprep.subr.bf16.mxu0 0
    %114 = vmatpush1.bf16.msra.mxu0 %v94
    %115 = vmatprep.subr.bf16.mxu0 0
    %116 = vmatpush1.bf16.msra.mxu0 %v95
    %117 = vmatprep.subr.bf16.mxu0 0
    %118 = vmatpush1.bf16.msra.mxu0 %v96
    %119 = vmatprep.subr.bf16.mxu0 0
    %120 = vmatpush1.bf16.msra.mxu0 %v97
    %121 = vmatprep.subr.bf16.mxu0 0
    %122 = vmatpush1.bf16.msra.mxu0 %v98
    %123 = vmatprep.subr.bf16.mxu0 0
    %124 = vmatpush1.bf16.msra.mxu0 0
    %125 = vmatprep.subr.bf16.mxu0 0
    %126 = vmatpush1.bf16.msra.mxu0 0
    %127 = vmatprep.subr.bf16.mxu0 0
    %128 = vmatpush1.bf16.msra.mxu0 0
    %129 = vmatprep.subr.bf16.mxu0 0
    %130 = vmatpush1.bf16.msra.mxu0 0
    %131 = vmatprep.subr.bf16.mxu0 0
    %132 = vmatpush1.bf16.msra.mxu0 0
    %133 = vmatprep.subr.bf16.mxu0 0
    %134 = vmatpush1.bf16.msra.mxu0 0
    %135 = vmatprep.subr.bf16.mxu0 0
    %136 = vmatpush1.bf16.msra.mxu0 0
    %137 = vmatprep.subr.bf16.mxu0 0
    %138 = vmatpush1.bf16.msra.mxu0 0
    %139 = vmatprep.mubr.bf16.mxu0 0
    %140 = vmatmul.mubr.bf16.gmra.mrb[0].mxu0 %v34
    %v141 = vpop.f32.mrb[0].mxu0
    %v142 = vadd.f32 %v57, %v141
    %v143 = vpop.f32.mrb[0].mxu0
    %v144 = vpop.f32.mrb[0].mxu0
    %v145 = vadd.f32 %v57, %v144
    %v146 = vpop.f32.mrb[0].mxu0
    %147 = vmatprep.mubr.bf16.mxu0 0
    %148 = vmatmul.mubr.bf16.gmra.mrb[0].mxu0 %v35
    %v149 = vpop.f32.mrb[0].mxu0
    %v150 = vadd.f32 %v57, %v149
    %v151 = vpop.f32.mrb[0].mxu0
    %v152 = vpop.f32.mrb[0].mxu0
    %v153 = vadd.f32 %v57, %v152
    %v154 = vpop.f32.mrb[0].mxu0
    %155 = vdwg.mxu0
    %v156 = vmul.f32 %v142, %v142
    %v157 = vmul.f32 %v145, %v145
    %v158 = vmul.f32 %v150, %v150
    %v159 = vmul.f32 %v153, %v153
    %v160 = vmul.f32 %v142, %v156
    %v161 = vmul.f32 %v145, %v157
    %v162 = vmul.f32 %v150, %v158
    %v163 = vmul.f32 %v153, %v159
    %v164 = vmul.f32 %v160, 0.044715
    %v165 = vmul.f32 %v161, 0.044715
    %v166 = vmul.f32 %v162, 0.044715
    %v167 = vmul.f32 %v163, 0.044715
    %v168 = vadd.f32 %v142, %v164
    %v169 = vadd.f32 %v145, %v165
    %v170 = vadd.f32 %v150, %v166
    %v171 = vadd.f32 %v153, %v167
    %v172 = vmul.f32 %v168, 0.7978846
    %v173 = vmul.f32 %v169, 0.7978846
    %v174 = vmul.f32 %v170, 0.7978846
    %v175 = vmul.f32 %v171, 0.7978846
    %v176 = vtanh.pop %v172
    %v177 = vtanh.pop %v173
    %v178 = vtanh.pop %v174
    %v179 = vtanh.pop %v175
    %v180 = vadd.f32 %v176, 1.0
    %v181 = vadd.f32 %v177, 1.0
    %v182 = vadd.f32 %v178, 1.0
    %v183 = vadd.f32 %v179, 1.0
    %v184 = vmul.f32 %v180, 0.5
    %v185 = vmul.f32 %v181, 0.5
    %v186 = vmul.f32 %v182, 0.5
    %v187 = vmul.f32 %v183, 0.5
    %v188 = vmul.f32 %v142, %v184
    %v189 = vmul.f32 %v145, %v185
    %v190 = vmul.f32 %v150, %v186
    %v191 = vmul.f32 %v153, %v187
    %v192 = vld [vmem:[#allocation2] sm:$0xff]
    %v193 = vld [vmem:[#allocation2 + $0x8] sm:$0xff]
    %v194 = vld [vmem:[#allocation2 + $0x10] sm:$0xff]
    %v195 = vld [vmem:[#allocation2 + $0x18] sm:$0xff]
    %v196 = vpack.c.bf16 %v189, %v188
    %v197 = vpack.c.bf16 %v191, %v190
    %v198 = vld [vmem:[%s3] sm:$0xf]
    %v199 = vld [vmem:[%s3 + $0x4] sm:$0xf]
    %v200 = vld [vmem:[%s3 + $0x8] sm:$0xf]
    %v201 = vld [vmem:[%s3 + $0xc] sm:$0xf]
    %v202 = vld [vmem:[%s3 + $0x10] sm:$0xf]
    %v203 = vld [vmem:[%s3 + $0x14] sm:$0xf]
    %v204 = vld [vmem:[%s3 + $0x18] sm:$0xf]
    %v205 = vld [vmem:[%s3 + $0x1c] sm:$0xf]
    %v206 = vld [vmem:[%s3 + $0x20] sm:$0xf]
    %v207 = vld [vmem:[%s3 + $0x24] sm:$0xf]
    %v208 = vld [vmem:[%s3 + $0x28] sm:$0xf]
    %v209 = vld [vmem:[%s3 + $0x2c] sm:$0xf]
    %v210 = vld [vmem:[%s3 + $0x30] sm:$0xf]
    %v211 = vld [vmem:[%s3 + $0x34] sm:$0xf]
    %v212 = vld [vmem:[%s3 + $0x38] sm:$0xf]
    %v213 = vld [vmem:[%s3 + $0x3c] sm:$0xf]
    %v230 = vunpack.c.l.b16 %v198
    %v231 = vunpack.c.l.b16 %v199
    %v232 = vunpack.c.l.b16 %v200
    %v233 = vunpack.c.l.b16 %v201
    %v234 = vunpack.c.l.b16 %v202
    %v235 = vunpack.c.l.b16 %v203
    %v236 = vunpack.c.l.b16 %v204
    %v237 = vunpack.c.l.b16 %v205
    %v238 = vunpack.c.l.b16 %v206
    %v239 = vunpack.c.l.b16 %v207
    %v240 = vunpack.c.l.b16 %v208
    %v241 = vunpack.c.l.b16 %v209
    %v242 = vunpack.c.l.b16 %v210
    %v243 = vunpack.c.l.b16 %v211
    %v244 = vunpack.c.l.b16 %v212
    %v245 = vunpack.c.l.b16 %v213
    %v246 = vpack.c.b16 %v231, %v230
    %v247 = vpack.c.b16 %v233, %v232
    %v248 = vpack.c.b16 %v235, %v234
    %v249 = vpack.c.b16 %v237, %v236
    %v250 = vpack.c.b16 %v239, %v238
    %v251 = vpack.c.b16 %v241, %v240
    %v252 = vpack.c.b16 %v243, %v242
    %v253 = vpack.c.b16 %v245, %v244
    %262 = vmatprep.subr.bf16.mxu0 0
    %263 = vmatpush1.bf16.msra.mxu0 %v246
    %264 = vmatprep.subr.bf16.mxu0 0
    %265 = vmatpush1.bf16.msra.mxu0 %v247
    %266 = vmatprep.subr.bf16.mxu0 0
    %267 = vmatpush1.bf16.msra.mxu0 %v248
    %268 = vmatprep.subr.bf16.mxu0 0
    %269 = vmatpush1.bf16.msra.mxu0 %v249
    %270 = vmatprep.subr.bf16.mxu0 0
    %271 = vmatpush1.bf16.msra.mxu0 %v250
    %272 = vmatprep.subr.bf16.mxu0 0
    %273 = vmatpush1.bf16.msra.mxu0 %v251
    %274 = vmatprep.subr.bf16.mxu0 0
    %275 = vmatpush1.bf16.msra.mxu0 %v252
    %276 = vmatprep.subr.bf16.mxu0 0
    %277 = vmatpush1.bf16.msra.mxu0 %v253
    %278 = vmatprep.subr.bf16.mxu0 0
    %279 = vmatpush1.bf16.msra.mxu0 0
    %280 = vmatprep.subr.bf16.mxu0 0
    %281 = vmatpush1.bf16.msra.mxu0 0
    %282 = vmatprep.subr.bf16.mxu0 0
    %283 = vmatpush1.bf16.msra.mxu0 0
    %284 = vmatprep.subr.bf16.mxu0 0
    %285 = vmatpush1.bf16.msra.mxu0 0
    %286 = vmatprep.subr.bf16.mxu0 0
    %287 = vmatpush1.bf16.msra.mxu0 0
    %288 = vmatprep.subr.bf16.mxu0 0
    %289 = vmatpush1.bf16.msra.mxu0 0
    %290 = vmatprep.subr.bf16.mxu0 0
    %291 = vmatpush1.bf16.msra.mxu0 0
    %292 = vmatprep.subr.bf16.mxu0 0
    %293 = vmatpush1.bf16.msra.mxu0 0
    %294 = vmatprep.mubr.bf16.mxu0 0
    %295 = vmatmul.mubr.bf16.gmra.mrb[0].mxu0 %v196
    %v296 = vpop.f32.mrb[0].mxu0
    %v297 = vadd.f32 0.0, %v296
    %v298 = vpop.f32.mrb[0].mxu0
    %v299 = vpop.f32.mrb[0].mxu0
    %v300 = vadd.f32 0.0, %v299
    %v301 = vpop.f32.mrb[0].mxu0
    %302 = vmatprep.mubr.bf16.mxu0 0
    %303 = vmatmul.mubr.bf16.gmra.mrb[0].mxu0 %v197
    %v304 = vpop.f32.mrb[0].mxu0
    %v305 = vadd.f32 0.0, %v304
    %v306 = vpop.f32.mrb[0].mxu0
    %v307 = vpop.f32.mrb[0].mxu0
    %v308 = vadd.f32 0.0, %v307
    %v309 = vpop.f32.mrb[0].mxu0
    %310 = vdwg.mxu0
    %v311 = vadd.f32 %v192, %v297
    %v312 = vadd.f32 %v193, %v300
    %v313 = vadd.f32 %v194, %v305
    %v314 = vadd.f32 %v195, %v308
    %315 = vst [vmem:[#allocation2] sm:$0xff] %v311
    %316 = vst [vmem:[#allocation2 + $0x8] sm:$0xff] %v312
    %317 = vst [vmem:[#allocation2 + $0x10] sm:$0xff] %v313
    %318 = vst [vmem:[#allocation2 + $0x18] sm:$0xff] %v314
    // Predicated region
    $region26: #{_mlp_forward.1} parent=1 // pred_check
      %p319 = pneg %p22
    $region27: #{_mlp_forward.1} parent=1 // pred_check_branch
      %321 = sbr.rel (%p319) target = $region29
    $region28: #{_mlp_forward.1} parent=1 // pred_region
      %v322 = vld [vmem:[#allocation2] sm:$0xff]
      %v323 = vld [vmem:[#allocation2 + $0x8] sm:$0xff]
      %v324 = vld [vmem:[#allocation2 + $0x10] sm:$0xff]
      %v325 = vld [vmem:[#allocation2 + $0x18] sm:$0xff]
      %v326 = vld [vmem:[%s4] sm:$0x1]
      %v328 = vlaneseq
      %v329 = vshrl.u32 %v328, 7
      %v330 = vsub.s32 0, %v329
      %v331 = vrot.slane %v326, %v330
      %v333 = vadd.f32 %v322, %v331
      %v334 = vadd.f32 %v323, %v331
      %v335 = vadd.f32 %v324, %v331
      %v336 = vadd.f32 %v325, %v331
      %337 = vst [vmem:[#allocation3] sm:$0xff] %v333
      %338 = vst [vmem:[#allocation3 + $0x8] sm:$0xff] %v334
      %339 = vst [vmem:[#allocation3 + $0x10] sm:$0xff] %v335
      %340 = vst [vmem:[#allocation3 + $0x18] sm:$0xff] %v336
    $region29: #{_mlp_forward.1} parent=1 // pred_fallthru
      _
    // Predicated region
    $region30: #{_mlp_forward.1} parent=1 // pred_check
      _
    $region31: #{_mlp_forward.1} parent=1 // pred_check_branch
      %342 = sbr.rel (0) target = $region33
    $region32: #{_mlp_forward.1} parent=1 // pred_region
      %s344 = ssub.s32 512, 512
      %345 = vsyncadd [#allocation4], %s344
      %s346 = sshll.u32 [#allocation3], 4
      %s347 = int_to_ptr.vmem [resolvable:$true] %s346
      %352 = dma.vmem_to_hbm [thread:$0]  %s347, 512, %s5, [#allocation4], 128, 128, 8
    $region33: #{_mlp_forward.1} parent=1 // pred_fallthru
      _
    // Predicated region
    $region34: #{_mlp_forward.1} parent=1 // pred_check
      _
    $region35: #{_mlp_forward.1} parent=1 // pred_check_branch
      %354 = sbr.rel (0) target = $region37
    $region36: #{_mlp_forward.1} parent=1 // pred_region
      %355 = dma.done [#allocation4], 512
    $region37: #{_mlp_forward.1} parent=1 // pred_fallthru
      _
    %356 = vsyncpa [#allocation4], 1

</llo_original>
